<compile_context>
chip_gen: v7x
topology: tpu7x:2x2x1
jax: 0.10.0
libtpu: 0.0.40
codegen_flags: <defaults>
</compile_context>

<pallas_src>
import functools

import jax
import jax.numpy as jnp
from jax.experimental import pallas as pl
from jax.experimental.pallas import tpu as pltpu


_TR_MAX = 512          # sublane rows per block: (8, 512, 128) f32 = 2 MiB


def _cdiv(a, b):
    return -(-a // b)


def _pick_tile(n):
    """Return (r_pad, tr): padded row count and rows-per-block.

    A "row" is 128 boxes (the lane axis).  Both values are multiples of 8 so
    (tr, 128) blocks satisfy the (8, 128) tiling constraint, tr is capped at
    _TR_MAX (~2 MiB input blocks), and the grid keeps >= 2 steps whenever
    possible (v7x 2-TensorCore sharding).
    """
    r = max(8, _cdiv(_cdiv(n, 128), 8) * 8)          # sublane-aligned rows
    nb = max(_cdiv(r, _TR_MAX), 2 if r > 8 else 1)   # grid steps
    tr = _cdiv(_cdiv(r, nb), 8) * 8                  # rows per block
    return nb * tr, tr


def _iou_loss_planes(pt_ref):
    """Per-box IoU loss from an (8, TR, 128) packed block -> (TR, 128).

    Component planes are loaded one at a time straight from the ref (keeps
    the live vreg set small); every op below is a dense full-vreg VPU op.
    """
    p_x, p_y, p_w, p_h = pt_ref[0], pt_ref[1], pt_ref[2], pt_ref[3]
    t_x, t_y, t_w, t_h = pt_ref[4], pt_ref[5], pt_ref[6], pt_ref[7]

    tl_x = jnp.maximum(p_x - 0.5 * p_w, t_x - 0.5 * t_w)
    tl_y = jnp.maximum(p_y - 0.5 * p_h, t_y - 0.5 * t_h)
    br_x = jnp.minimum(p_x + 0.5 * p_w, t_x + 0.5 * t_w)
    br_y = jnp.minimum(p_y + 0.5 * p_h, t_y + 0.5 * t_h)

    area_p = p_w * p_h
    area_g = t_w * t_h

    inter = (br_x - tl_x) * (br_y - tl_y)
    en = jnp.logical_and(tl_x < br_x, tl_y < br_y)   # strict <, as in torch
    area_i = jnp.where(en, inter, 0.0)

    denom = area_p + area_g - area_i + 1e-16
    inv = pl.reciprocal(denom, approx=True)          # EUP slot (free here)
    inv = inv * (2.0 - denom * inv)                  # Newton step -> ~f32 exact
    iou = area_i * inv
    return 1.0 - iou * iou


def _iou_loss_kernel(pt_ref, o_ref):
    # o_ref: (TR, 128) lane- and sublane-dense per-box loss.
    o_ref[...] = _iou_loss_planes(pt_ref)


def _iou_loss_partial_sum_kernel(pt_ref, o_ref):
    # o_ref: (1, 8, 128) per-block partial sum.  Blocks are independent so
    # both v7x TensorCores can run; the final tiny sum happens in XLA.
    loss = _iou_loss_planes(pt_ref)                          # (TR, 128)
    tr = loss.shape[0]
    partial = jnp.sum(loss.reshape(tr // 8, 8, 128), axis=0)  # VALU-only reduce
    o_ref[...] = partial[None]


@functools.partial(jax.jit, static_argnames=("reduction",))
def iou_loss(pred, target, reduction="none"):
    """Pallas TPU implementation of IOUloss.forward."""
    p = pred.reshape(-1, 4).astype(jnp.float32)
    t = target.reshape(-1, 4).astype(jnp.float32)
    n = p.shape[0]
    r_pad, tr = _pick_tile(n)
    n_pad = r_pad * 128

    # Pack pred+target into (8, r_pad, 128) component planes (one fused XLA
    # pad+transpose).  Padded boxes are "neutral": pred == target with
    # w = h = 0.5 gives iou == 1 and loss == 0, so the fused reduction needs
    # no in-kernel masking and the 'none' path just slices [:n].
    # TODO(synk): accept a pre-packed (8, R, 128) slab from the caller (or
    # de-interleave in-kernel via manual DMA) to avoid this extra HBM pass.
    pt = jnp.concatenate([p, t], axis=1)                     # (n, 8)
    if n_pad != n:
        pt = jnp.pad(pt, ((0, n_pad - n), (0, 0)), constant_values=0.5)
    slab = pt.T.reshape(8, r_pad, 128)

    nb = r_pad // tr
    in_spec = pl.BlockSpec((8, tr, 128), lambda i: (0, i, 0))
    params = pltpu.CompilerParams(dimension_semantics=("parallel",))

    if reduction in ("mean", "sum"):
        partials = pl.pallas_call(
            _iou_loss_partial_sum_kernel,
            out_shape=jax.ShapeDtypeStruct((nb, 8, 128), jnp.float32),
            grid=(nb,),
            in_specs=[in_spec],
            out_specs=pl.BlockSpec((1, 8, 128), lambda i: (i, 0, 0)),
            compiler_params=params,
        )(slab)
        total = jnp.sum(partials)
        return total / n if reduction == "mean" else total

    out = pl.pallas_call(
        _iou_loss_kernel,
        out_shape=jax.ShapeDtypeStruct((r_pad, 128), jnp.float32),
        grid=(nb,),
        in_specs=[in_spec],
        out_specs=pl.BlockSpec((tr, 128), lambda i: (i, 0)),
        compiler_params=params,
    )(slab)
    return out.reshape(-1)[:n]                               # per-box loss (N,)


def _iou_loss_ref(pred, target, reduction="none"):
    """Pure-JAX reference mirroring the PyTorch module."""
    p = pred.reshape(-1, 4).astype(jnp.float32)
    t = target.reshape(-1, 4).astype(jnp.float32)
    tl = jnp.maximum(p[:, :2] - p[:, 2:] / 2, t[:, :2] - t[:, 2:] / 2)
    br = jnp.minimum(p[:, :2] + p[:, 2:] / 2, t[:, :2] + t[:, 2:] / 2)
    area_p = jnp.prod(p[:, 2:], axis=1)
    area_g = jnp.prod(t[:, 2:], axis=1)
    en = jnp.prod((tl < br).astype(jnp.float32), axis=1)
    area_i = jnp.prod(br - tl, axis=1) * en
    iou = area_i / (area_p + area_g - area_i + 1e-16)
    loss = 1 - iou ** 2
    if reduction == "mean":
        loss = loss.mean()
    elif reduction == "sum":
        loss = loss.sum()
    return loss


if __name__ == "__main__":
    key = jax.random.PRNGKey(0)
    k1, k2, k3, k4 = jax.random.split(key, 4)

    # Boxes: (B, A, 4) in (cx, cy, w, h); N = 2*150 = 300 boxes (not a
    # multiple of 128 -> exercises lane padding / neutral-box reduction).
    B, A = 2, 150
    pred = jnp.concatenate(
        [jax.random.uniform(k1, (B, A, 2), jnp.float32, minval=0.0, maxval=10.0),
         jax.random.uniform(k2, (B, A, 2), jnp.float32, minval=0.5, maxval=4.0)],
        axis=-1)
    target = jnp.concatenate(
        [jax.random.uniform(k3, (B, A, 2), jnp.float32, minval=0.0, maxval=10.0),
         jax.random.uniform(k4, (B, A, 2), jnp.float32, minval=0.5, maxval=4.0)],
        axis=-1)

    n = B * A
    out = jax.block_until_ready(iou_loss(pred, target, reduction="none"))
    ref = _iou_loss_ref(pred, target, reduction="none")
    assert out.shape == ref.shape == (n,)
    assert jnp.allclose(out, ref, atol=1e-5, rtol=1e-5)

    # Fused (per-block partial-sum) reduction variants.
    for red in ("mean", "sum"):
        o = jax.block_until_ready(iou_loss(pred, target, reduction=red))
        r = _iou_loss_ref(pred, target, reduction=red)
        assert jnp.allclose(o, r, atol=1e-4, rtol=1e-5), (red, o, r)

    print("KERNEL_OK")
</pallas_src>

<mosaic_0001>
module attributes {stable_mosaic.version = 11 : i64} {
  func.func @_iou_loss_kernel(%arg0: i32, %arg1: memref<8x8x128xf32, #tpu.memory_space<vmem>>, %arg2: memref<8x128xf32, #tpu.memory_space<vmem>>) attributes {dimension_semantics = [#tpu.dimension_semantics<parallel>], iteration_bounds = array<i64: 1>, scalar_prefetch = 0 : i64, scratch_operands = 0 : i64, tpu.core_type = #tpu.core_type<tc>, window_params = [{transform_indices = @transform_0, window_bounds = array<i64: 8, 8, 128>}, {transform_indices = @transform_1, window_bounds = array<i64: 8, 128>}]} {
    %c0 = arith.constant 0 : index
    %c0_0 = arith.constant 0 : index
    %c0_1 = arith.constant 0 : index
    %0 = vector.load %arg1[%c0, %c0_0, %c0_1] : memref<8x8x128xf32, #tpu.memory_space<vmem>>, vector<1x8x128xf32>
    %1 = vector.shape_cast %0 : vector<1x8x128xf32> to vector<8x128xf32>
    %c1 = arith.constant 1 : index
    %c0_2 = arith.constant 0 : index
    %c0_3 = arith.constant 0 : index
    %2 = vector.load %arg1[%c1, %c0_2, %c0_3] : memref<8x8x128xf32, #tpu.memory_space<vmem>>, vector<1x8x128xf32>
    %3 = vector.shape_cast %2 : vector<1x8x128xf32> to vector<8x128xf32>
    %c2 = arith.constant 2 : index
    %c0_4 = arith.constant 0 : index
    %c0_5 = arith.constant 0 : index
    %4 = vector.load %arg1[%c2, %c0_4, %c0_5] : memref<8x8x128xf32, #tpu.memory_space<vmem>>, vector<1x8x128xf32>
    %5 = vector.shape_cast %4 : vector<1x8x128xf32> to vector<8x128xf32>
    %c3 = arith.constant 3 : index
    %c0_6 = arith.constant 0 : index
    %c0_7 = arith.constant 0 : index
    %6 = vector.load %arg1[%c3, %c0_6, %c0_7] : memref<8x8x128xf32, #tpu.memory_space<vmem>>, vector<1x8x128xf32>
    %7 = vector.shape_cast %6 : vector<1x8x128xf32> to vector<8x128xf32>
    %c4 = arith.constant 4 : index
    %c0_8 = arith.constant 0 : index
    %c0_9 = arith.constant 0 : index
    %8 = vector.load %arg1[%c4, %c0_8, %c0_9] : memref<8x8x128xf32, #tpu.memory_space<vmem>>, vector<1x8x128xf32>
    %9 = vector.shape_cast %8 : vector<1x8x128xf32> to vector<8x128xf32>
    %c5 = arith.constant 5 : index
    %c0_10 = arith.constant 0 : index
    %c0_11 = arith.constant 0 : index
    %10 = vector.load %arg1[%c5, %c0_10, %c0_11] : memref<8x8x128xf32, #tpu.memory_space<vmem>>, vector<1x8x128xf32>
    %11 = vector.shape_cast %10 : vector<1x8x128xf32> to vector<8x128xf32>
    %c6 = arith.constant 6 : index
    %c0_12 = arith.constant 0 : index
    %c0_13 = arith.constant 0 : index
    %12 = vector.load %arg1[%c6, %c0_12, %c0_13] : memref<8x8x128xf32, #tpu.memory_space<vmem>>, vector<1x8x128xf32>
    %13 = vector.shape_cast %12 : vector<1x8x128xf32> to vector<8x128xf32>
    %c7 = arith.constant 7 : index
    %c0_14 = arith.constant 0 : index
    %c0_15 = arith.constant 0 : index
    %14 = vector.load %arg1[%c7, %c0_14, %c0_15] : memref<8x8x128xf32, #tpu.memory_space<vmem>>, vector<1x8x128xf32>
    %15 = vector.shape_cast %14 : vector<1x8x128xf32> to vector<8x128xf32>
    %cst = arith.constant 5.000000e-01 : f32
    %16 = vector.broadcast %cst : f32 to vector<8x128xf32>
    %17 = arith.mulf %16, %5 : vector<8x128xf32>
    %18 = arith.subf %1, %17 : vector<8x128xf32>
    %cst_16 = arith.constant 5.000000e-01 : f32
    %19 = vector.broadcast %cst_16 : f32 to vector<8x128xf32>
    %20 = arith.mulf %19, %13 : vector<8x128xf32>
    %21 = arith.subf %9, %20 : vector<8x128xf32>
    %22 = arith.maximumf %18, %21 : vector<8x128xf32>
    %cst_17 = arith.constant 5.000000e-01 : f32
    %23 = vector.broadcast %cst_17 : f32 to vector<8x128xf32>
    %24 = arith.mulf %23, %7 : vector<8x128xf32>
    %25 = arith.subf %3, %24 : vector<8x128xf32>
    %cst_18 = arith.constant 5.000000e-01 : f32
    %26 = vector.broadcast %cst_18 : f32 to vector<8x128xf32>
    %27 = arith.mulf %26, %15 : vector<8x128xf32>
    %28 = arith.subf %11, %27 : vector<8x128xf32>
    %29 = arith.maximumf %25, %28 : vector<8x128xf32>
    %cst_19 = arith.constant 5.000000e-01 : f32
    %30 = vector.broadcast %cst_19 : f32 to vector<8x128xf32>
    %31 = arith.mulf %30, %5 : vector<8x128xf32>
    %32 = arith.addf %1, %31 : vector<8x128xf32>
    %cst_20 = arith.constant 5.000000e-01 : f32
    %33 = vector.broadcast %cst_20 : f32 to vector<8x128xf32>
    %34 = arith.mulf %33, %13 : vector<8x128xf32>
    %35 = arith.addf %9, %34 : vector<8x128xf32>
    %36 = arith.minimumf %32, %35 : vector<8x128xf32>
    %cst_21 = arith.constant 5.000000e-01 : f32
    %37 = vector.broadcast %cst_21 : f32 to vector<8x128xf32>
    %38 = arith.mulf %37, %7 : vector<8x128xf32>
    %39 = arith.addf %3, %38 : vector<8x128xf32>
    %cst_22 = arith.constant 5.000000e-01 : f32
    %40 = vector.broadcast %cst_22 : f32 to vector<8x128xf32>
    %41 = arith.mulf %40, %15 : vector<8x128xf32>
    %42 = arith.addf %11, %41 : vector<8x128xf32>
    %43 = arith.minimumf %39, %42 : vector<8x128xf32>
    %44 = arith.mulf %5, %7 : vector<8x128xf32>
    %45 = arith.mulf %13, %15 : vector<8x128xf32>
    %46 = arith.subf %36, %22 : vector<8x128xf32>
    %47 = arith.subf %43, %29 : vector<8x128xf32>
    %48 = arith.mulf %46, %47 : vector<8x128xf32>
    %49 = arith.cmpf olt, %22, %36 : vector<8x128xf32>
    %50 = arith.cmpf olt, %29, %43 : vector<8x128xf32>
    %51 = arith.andi %49, %50 : vector<8x128xi1>
    %cst_23 = arith.constant 0.000000e+00 : f32
    %52 = vector.broadcast %cst_23 : f32 to vector<8x128xf32>
    %53 = arith.select %51, %48, %52 : vector<8x128xi1>, vector<8x128xf32>
    %54 = arith.addf %44, %45 : vector<8x128xf32>
    %55 = arith.subf %54, %53 : vector<8x128xf32>
    %cst_24 = arith.constant 1.000000e-16 : f32
    %56 = vector.broadcast %cst_24 : f32 to vector<8x128xf32>
    %57 = arith.addf %55, %56 : vector<8x128xf32>
    %58 = tpu.reciprocal %57 {approx = true} : vector<8x128xf32> -> vector<8x128xf32>
    %59 = arith.mulf %57, %58 : vector<8x128xf32>
    %cst_25 = arith.constant 2.000000e+00 : f32
    %60 = vector.broadcast %cst_25 : f32 to vector<8x128xf32>
    %61 = arith.subf %60, %59 : vector<8x128xf32>
    %62 = arith.mulf %58, %61 : vector<8x128xf32>
    %63 = arith.mulf %53, %62 : vector<8x128xf32>
    %64 = arith.mulf %63, %63 : vector<8x128xf32>
    %cst_26 = arith.constant 1.000000e+00 : f32
    %65 = vector.broadcast %cst_26 : f32 to vector<8x128xf32>
    %66 = arith.subf %65, %64 : vector<8x128xf32>
    %c0_27 = arith.constant 0 : index
    %c0_28 = arith.constant 0 : index
    %67 = vector.load %arg2[%c0_27, %c0_28] : memref<8x128xf32, #tpu.memory_space<vmem>>, vector<8x128xf32>
    tpu.vector_store %arg2[%c0_27, %c0_28], %66 {strides = array<i32>} : memref<8x128xf32, #tpu.memory_space<vmem>>, vector<8x128xf32>,
    return
  }
  func.func @transform_0(%arg0: i32) -> (i32, i32, i32) {
    %c0_i32 = arith.constant 0 : i32
    %c0_i32_0 = arith.constant 0 : i32
    %c0_i32_1 = arith.constant 0 : i32
    return %c0_i32, %arg0, %c0_i32_0 : i32, i32, i32
  }
  func.func @transform_1(%arg0: i32) -> (i32, i32) {
    %c0_i32 = arith.constant 0 : i32
    %c0_i32_0 = arith.constant 0 : i32
    return %arg0, %c0_i32 : i32, i32
  }
}

</mosaic_0001>

<llo_original>
// kernel: iou_loss.1
$region0: #{iou_loss.1}
  #allocation0 [shape = 'u32[]', space=smem, size = 0x4, offset = 0x4, fixed_abs, tag = 'smem constant byte address 0x4 - core index']
  #allocation1 [shape = 'u32[144,128]{1,0:T(1,128)}', space=vmem, size = 0x12000, scoped, tag = 'internal scratch']
  %s0 = inlined_call_operand.vmem [shape: f32[8,8,128], index: 0, kind: input, shape index: {}]
  %s1 = inlined_call_operand.vmem [shape: f32[8,128], index: 1, kind: output, shape index: {}]
  %s2 = sld [smem:[#allocation0]]
  $region14: #{iou_loss.1} parent=0
    _
  %s4 = ssub.s32 1, %s2
  %s5 = scalar_select 0, %s4, %s2
  // Predicated region
  $region2: #{iou_loss.1} parent=0 // pred_check
    _
  $region3: #{iou_loss.1} parent=0 // pred_check_branch
    %7 = sbr.rel (0) target = $region5
  $region4: #{iou_loss.1} parent=0 // pred_region
    _
  $region5: #{iou_loss.1} parent=0 // pred_fallthru
    _
  %v8 = vld [vmem:[%s0] sm:$0xff]
  %s9 = scalar_lea.vmem %s0, 8
  %v10 = vld [vmem:[%s9] sm:$0xff]
  %s11 = scalar_lea.vmem %s0, 16
  %v12 = vld [vmem:[%s11] sm:$0xff]
  %s13 = scalar_lea.vmem %s0, 24
  %v14 = vld [vmem:[%s13] sm:$0xff]
  %s15 = scalar_lea.vmem %s0, 32
  %v16 = vld [vmem:[%s15] sm:$0xff]
  %s17 = scalar_lea.vmem %s0, 40
  %v18 = vld [vmem:[%s17] sm:$0xff]
  %s19 = scalar_lea.vmem %s0, 48
  %v20 = vld [vmem:[%s19] sm:$0xff]
  %s21 = scalar_lea.vmem %s0, 56
  %v22 = vld [vmem:[%s21] sm:$0xff]
  %v23 = vmul.f32 %v12, 0.5
  %v24 = vsub.f32 %v8, %v23
  %v25 = vmul.f32 %v20, 0.5
  %v26 = vsub.f32 %v16, %v25
  %v27 = vmax.f32 %v24, %v26
  %v28 = vmul.f32 %v14, 0.5
  %v29 = vsub.f32 %v10, %v28
  %v30 = vmul.f32 %v22, 0.5
  %v31 = vsub.f32 %v18, %v30
  %v32 = vmax.f32 %v29, %v31
  %v33 = vadd.f32 %v8, %v23
  %v34 = vadd.f32 %v16, %v25
  %v35 = vmin.f32 %v33, %v34
  %v36 = vadd.f32 %v10, %v28
  %v37 = vadd.f32 %v18, %v30
  %v38 = vmin.f32 %v36, %v37
  %v39 = vmul.f32 %v12, %v14
  %v40 = vmul.f32 %v20, %v22
  %v41 = vsub.f32 %v35, %v27
  %v42 = vsub.f32 %v38, %v32
  %v43 = vmul.f32 %v41, %v42
  %vm44 = vcmp.lt.f32.partialorder %v27, %v35
  %vm45 = vcmp.lt.f32.partialorder %v32, %v38
  %vm46 = vmand %vm44, %vm45
  %v47 = vsel %vm46, %v43, 0.0
  %v48 = vadd.f32 %v39, %v40
  %v49 = vsub.f32 %v48, %v47
  %v50 = vadd.f32 %v49, 1e-16
  %v51 = vrcp.pop %v50
  %v52 = vmul.f32 %v50, %v51
  %v53 = vsub.f32 2.0, %v52
  %v54 = vmul.f32 %v51, %v53
  %v55 = vmul.f32 %v47, %v54
  %v56 = vmul.f32 %v55, %v55
  %v57 = vsub.f32 1.0, %v56
  %58 = vst [vmem:[%s1] sm:$0xff] %v57
  // Predicated region
  $region6: #{iou_loss.1} parent=0 // pred_check
    _
  $region7: #{iou_loss.1} parent=0 // pred_check_branch
    %60 = sbr.rel (0) target = $region9
  $region8: #{iou_loss.1} parent=0 // pred_region
    _
  $region9: #{iou_loss.1} parent=0 // pred_fallthru
    _
  // Predicated region
  $region10: #{iou_loss.1} parent=0 // pred_check
    _
  $region11: #{iou_loss.1} parent=0 // pred_check_branch
    %62 = sbr.rel (0) target = $region13
  $region12: #{iou_loss.1} parent=0 // pred_region
    _
  $region13: #{iou_loss.1} parent=0 // pred_fallthru
    _

</llo_original>
